<compile_context>
chip_gen: v7x
topology: tpu7x:2x2x1
jax: 0.10.0
libtpu: 0.0.40
codegen_flags: <defaults>
</compile_context>

<pallas_src>
import jax
import jax.numpy as jnp
from jax.experimental import pallas as pl
from jax.experimental.pallas import tpu as pltpu

LANE = 128            # vreg lane width / padded hidden width
OUT_PAD = 8           # narrow padded output width (real output is 1 column)
BN_EPS = 1e-5
MAX_BATCH_TILE = 2048
MIN_BATCH_TILE = 8


def _cdiv(a, b):
    return -(-a // b)


def _round_up(x, m):
    return ((x + m - 1) // m) * m


def _choose_batch_tiling(batch):
    """Pick (tb, b_pad): tiles <= MAX_BATCH_TILE, minimal padding, and >= 2
    grid steps when the batch allows (v7x dual-TensorCore sharding)."""
    n_steps = max(_cdiv(batch, MAX_BATCH_TILE), 1)
    if n_steps == 1 and batch >= 2 * MIN_BATCH_TILE:
        n_steps = 2
    tb = _round_up(_cdiv(batch, n_steps), 8)
    b_pad = _round_up(batch, tb)
    return tb, b_pad


# ----------------------------------------------------------------------------
# Kernel: whole network for one batch tile; weights resident across the grid.
# ----------------------------------------------------------------------------
def dnn_kernel(x_ref, w1_ref, wpack_ref, bpack_ref, w5_ref, b5_ref, o_ref):
    # Layer 1: (tb, dim1) bf16 @ (dim1, 128) bf16 -> f32; bias+ReLU on the VPU.
    h = jnp.dot(x_ref[...], w1_ref[...], preferred_element_type=jnp.float32)
    h = jnp.maximum(h + bpack_ref[0], 0.0)

    # Layers 2..4: VMEM-resident packed (128,128) bf16 weights.
    for j in range(3):
        z = jnp.dot(h.astype(jnp.bfloat16), wpack_ref[j],
                    preferred_element_type=jnp.float32)
        h = jnp.maximum(z + bpack_ref[j + 1], 0.0)

    # Final layer: narrow (tb, 8) slab (only column 0 is real data).
    z = jnp.dot(h.astype(jnp.bfloat16), w5_ref[...],
                preferred_element_type=jnp.float32) + b5_ref[...]
    # Exact sigmoid: exp on the EUP; the divide is negligible on (tb, 8).
    o_ref[...] = 1.0 / (1.0 + jnp.exp(-z))


# ----------------------------------------------------------------------------
# Parameter construction (PyTorch-equivalent raw params) + fold/pad/cast glue.
# ----------------------------------------------------------------------------
def make_raw_params(key, dims):
    """Raw params mirroring the PyTorch module (weights stored as (in, out)).

    dims = [dim1, dim2, dim3, dim5, dim6, 1]
    Layers 1..4: (W, b, gamma, beta, running_mean, running_var)
    Layer 5:     (W, b)
    """
    raw = []
    for i in range(4):
        d_in, d_out = dims[i], dims[i + 1]
        key, kw, kb, kg, kbe, km, kv = jax.random.split(key, 7)
        w = jax.random.normal(kw, (d_in, d_out), jnp.float32) * 0.1
        b = jax.random.normal(kb, (d_out,), jnp.float32) * 0.1
        gamma = 1.0 + 0.1 * jax.random.normal(kg, (d_out,), jnp.float32)
        beta = 0.1 * jax.random.normal(kbe, (d_out,), jnp.float32)
        r_mean = 0.1 * jax.random.normal(km, (d_out,), jnp.float32)
        r_var = jnp.abs(jax.random.normal(kv, (d_out,), jnp.float32)) + 0.5
        raw.append((w, b, gamma, beta, r_mean, r_var))
    key, kw, kb = jax.random.split(key, 3)
    w5 = jax.random.normal(kw, (dims[4], dims[5]), jnp.float32) * 0.1
    b5 = jax.random.normal(kb, (dims[5],), jnp.float32) * 0.1
    raw.append((w5, b5))
    return raw


def _fold_bn(w, b, gamma, beta, r_mean, r_var):
    # BatchNorm1d (eval) folded into the preceding Linear, all in f32.
    scale = gamma / jnp.sqrt(r_var + BN_EPS)
    return w * scale[None, :], b * scale + (beta - r_mean * scale)


def fold_and_pad_params(raw_params, dims):
    """Fold BN(eval) into W/b; pad hidden widths to 128 lanes; keep the input
    width (dim1) and the output width (8-lane slab) narrow; cast weights to
    bf16 at the very end (biases stay f32)."""
    d_in = dims[0]

    # Layer 1: K stays dim1 (unpadded input lanes), N padded to 128.
    w, b = _fold_bn(*raw_params[0])
    w1 = jnp.zeros((d_in, LANE), jnp.float32).at[:, : dims[1]].set(w)

    # Layers 2..4 packed: (3, 128, 128) weights; biases b1..b4: (4, 1, 128).
    wpack = jnp.zeros((3, LANE, LANE), jnp.float32)
    bpack = jnp.zeros((4, 1, LANE), jnp.float32).at[0, 0, : dims[1]].set(b)
    for j in range(1, 4):
        w, b = _fold_bn(*raw_params[j])
        wpack = wpack.at[j - 1, : dims[j], : dims[j + 1]].set(w)
        bpack = bpack.at[j, 0, : dims[j + 1]].set(b)

    # Layer 5: narrow N = OUT_PAD (real output width is dims[5] = 1).
    w5_raw, b5_raw = raw_params[4]
    w5 = jnp.zeros((LANE, OUT_PAD), jnp.float32).at[: dims[4], : dims[5]].set(w5_raw)
    b5 = jnp.zeros((1, OUT_PAD), jnp.float32).at[0, : dims[5]].set(b5_raw)

    return (w1.astype(jnp.bfloat16), wpack.astype(jnp.bfloat16), bpack,
            w5.astype(jnp.bfloat16), b5)


# ----------------------------------------------------------------------------
# Wrapper: bf16 + sublane-pad x, launch batch-tiled pallas_call, slice output.
# ----------------------------------------------------------------------------
def dnn_forward(x, params, dims):
    batch, d_in = x.shape
    assert d_in == dims[0]
    w1, wpack, bpack, w5, b5 = params

    tb, b_pad = _choose_batch_tiling(batch)

    # bf16, batch-padded-only input: 2*dim1 bytes/row (no 128-lane padding).
    x_p = jnp.zeros((b_pad, d_in), jnp.bfloat16).at[:batch].set(
        x.astype(jnp.bfloat16))

    out_p = pl.pallas_call(
        dnn_kernel,
        out_shape=jax.ShapeDtypeStruct((b_pad, OUT_PAD), jnp.float32),
        grid=(b_pad // tb,),
        in_specs=[
            # x: batch-tiled, auto double-buffered.
            pl.BlockSpec((tb, d_in), lambda i: (i, 0)),
            # Weights / biases: full blocks, constant index_map -> resident.
            pl.BlockSpec(w1.shape, lambda i: (0, 0)),
            pl.BlockSpec(wpack.shape, lambda i: (0, 0, 0)),
            pl.BlockSpec(bpack.shape, lambda i: (0, 0, 0)),
            pl.BlockSpec(w5.shape, lambda i: (0, 0)),
            pl.BlockSpec(b5.shape, lambda i: (0, 0)),
        ],
        out_specs=pl.BlockSpec((tb, OUT_PAD), lambda i: (i, 0)),
        compiler_params=pltpu.CompilerParams(
            dimension_semantics=("parallel",)),
    )(x_p, w1, wpack, bpack, w5, b5)

    return out_p[:batch, : dims[5]]


# ----------------------------------------------------------------------------
# Plain-JAX f32 reference (PyTorch semantics, BN in eval mode).
# ----------------------------------------------------------------------------
def dnn_reference(x, raw_params):
    h = x
    for i in range(4):
        w, b, gamma, beta, r_mean, r_var = raw_params[i]
        h = h @ w + b
        h = (h - r_mean) / jnp.sqrt(r_var + BN_EPS) * gamma + beta
        h = jnp.maximum(h, 0.0)
    w5, b5 = raw_params[4]
    z = h @ w5 + b5
    return jax.nn.sigmoid(z)


if __name__ == "__main__":
    # dim1..dim6 hidden sizes from the module, output=1; small test batch.
    dims = [32, 64, 64, 48, 32, 1]
    batch = 8

    key = jax.random.PRNGKey(0)
    key, kx = jax.random.split(key)
    x = jax.random.normal(kx, (batch, dims[0]), jnp.float32)

    raw_params = make_raw_params(key, dims)
    params = fold_and_pad_params(raw_params, dims)

    out = dnn_forward(x, params, dims)
    out = jax.block_until_ready(out)

    ref = dnn_reference(x, raw_params)
    assert out.shape == (batch, 1)
    # bf16 matmul operands -> compare with loose tolerance.
    err = jnp.max(jnp.abs(out - ref))
    assert jnp.allclose(out, ref, atol=2e-2, rtol=2e-2), f"max abs err {err}"

    print("KERNEL_OK")
</pallas_src>

<mosaic_0001>
module attributes {stable_mosaic.version = 11 : i64} {
  func.func @dnn_kernel(%arg0: i32, %arg1: memref<8x32xbf16, #tpu.memory_space<vmem>>, %arg2: memref<32x128xbf16, #tpu.memory_space<vmem>>, %arg3: memref<3x128x128xbf16, #tpu.memory_space<vmem>>, %arg4: memref<4x1x128xf32, #tpu.memory_space<vmem>>, %arg5: memref<128x8xbf16, #tpu.memory_space<vmem>>, %arg6: memref<1x8xf32, #tpu.memory_space<vmem>>, %arg7: memref<8x8xf32, #tpu.memory_space<vmem>>) attributes {dimension_semantics = [#tpu.dimension_semantics<parallel>], iteration_bounds = array<i64: 1>, scalar_prefetch = 0 : i64, scratch_operands = 0 : i64, tpu.core_type = #tpu.core_type<tc>, window_params = [{transform_indices = @transform_0, window_bounds = array<i64: 8, 32>}, {pipeline_mode = #tpu.pipeline_mode<synchronous>, transform_indices = @transform_1, window_bounds = array<i64: 32, 128>}, {pipeline_mode = #tpu.pipeline_mode<synchronous>, transform_indices = @transform_2, window_bounds = array<i64: 3, 128, 128>}, {pipeline_mode = #tpu.pipeline_mode<synchronous>, transform_indices = @transform_3, window_bounds = array<i64: 4, 1, 128>}, {pipeline_mode = #tpu.pipeline_mode<synchronous>, transform_indices = @transform_4, window_bounds = array<i64: 128, 8>}, {pipeline_mode = #tpu.pipeline_mode<synchronous>, transform_indices = @transform_5, window_bounds = array<i64: 1, 8>}, {transform_indices = @transform_6, window_bounds = array<i64: 8, 8>}]} {
    %c0 = arith.constant 0 : index
    %c0_0 = arith.constant 0 : index
    %0 = vector.load %arg1[%c0, %c0_0] : memref<8x32xbf16, #tpu.memory_space<vmem>>, vector<8x32xbf16>
    %c0_1 = arith.constant 0 : index
    %c0_2 = arith.constant 0 : index
    %1 = vector.load %arg2[%c0_1, %c0_2] : memref<32x128xbf16, #tpu.memory_space<vmem>>, vector<32x128xbf16>
    %cst = arith.constant dense<0.000000e+00> : vector<8x128xf32>
    %2 = tpu.matmul %0, %1, %cst {dimension_numbers = #tpu.dot_dimension_numbers<[1], [0], [0], [1], [0, 0, 1, 1], [], []>} : vector<8x32xbf16>, vector<32x128xbf16>, vector<8x128xf32> -> vector<8x128xf32>
    %c0_3 = arith.constant 0 : index
    %c0_4 = arith.constant 0 : index
    %c0_5 = arith.constant 0 : index
    %3 = vector.load %arg4[%c0_3, %c0_4, %c0_5] : memref<4x1x128xf32, #tpu.memory_space<vmem>>, vector<1x1x128xf32>
    %4 = vector.shape_cast %3 : vector<1x1x128xf32> to vector<1x128xf32>
    %5 = vector.broadcast %4 : vector<1x128xf32> to vector<8x128xf32>
    %6 = arith.addf %2, %5 : vector<8x128xf32>
    %cst_6 = arith.constant 0.000000e+00 : f32
    %7 = vector.broadcast %cst_6 : f32 to vector<8x128xf32>
    %8 = arith.maximumf %6, %7 : vector<8x128xf32>
    %9 = arith.truncf %8 : vector<8x128xf32> to vector<8x128xbf16>
    %c0_7 = arith.constant 0 : index
    %c0_8 = arith.constant 0 : index
    %c0_9 = arith.constant 0 : index
    %10 = vector.load %arg3[%c0_7, %c0_8, %c0_9] : memref<3x128x128xbf16, #tpu.memory_space<vmem>>, vector<1x128x128xbf16>
    %11 = vector.shape_cast %10 : vector<1x128x128xbf16> to vector<128x128xbf16>
    %cst_10 = arith.constant dense<0.000000e+00> : vector<8x128xf32>
    %12 = tpu.matmul %9, %11, %cst_10 {dimension_numbers = #tpu.dot_dimension_numbers<[1], [0], [0], [1], [0, 0, 1, 1], [], []>} : vector<8x128xbf16>, vector<128x128xbf16>, vector<8x128xf32> -> vector<8x128xf32>
    %c1 = arith.constant 1 : index
    %c0_11 = arith.constant 0 : index
    %c0_12 = arith.constant 0 : index
    %13 = vector.load %arg4[%c1, %c0_11, %c0_12] : memref<4x1x128xf32, #tpu.memory_space<vmem>>, vector<1x1x128xf32>
    %14 = vector.shape_cast %13 : vector<1x1x128xf32> to vector<1x128xf32>
    %15 = vector.broadcast %14 : vector<1x128xf32> to vector<8x128xf32>
    %16 = arith.addf %12, %15 : vector<8x128xf32>
    %cst_13 = arith.constant 0.000000e+00 : f32
    %17 = vector.broadcast %cst_13 : f32 to vector<8x128xf32>
    %18 = arith.maximumf %16, %17 : vector<8x128xf32>
    %19 = arith.truncf %18 : vector<8x128xf32> to vector<8x128xbf16>
    %c1_14 = arith.constant 1 : index
    %c0_15 = arith.constant 0 : index
    %c0_16 = arith.constant 0 : index
    %20 = vector.load %arg3[%c1_14, %c0_15, %c0_16] : memref<3x128x128xbf16, #tpu.memory_space<vmem>>, vector<1x128x128xbf16>
    %21 = vector.shape_cast %20 : vector<1x128x128xbf16> to vector<128x128xbf16>
    %cst_17 = arith.constant dense<0.000000e+00> : vector<8x128xf32>
    %22 = tpu.matmul %19, %21, %cst_17 {dimension_numbers = #tpu.dot_dimension_numbers<[1], [0], [0], [1], [0, 0, 1, 1], [], []>} : vector<8x128xbf16>, vector<128x128xbf16>, vector<8x128xf32> -> vector<8x128xf32>
    %c2 = arith.constant 2 : index
    %c0_18 = arith.constant 0 : index
    %c0_19 = arith.constant 0 : index
    %23 = vector.load %arg4[%c2, %c0_18, %c0_19] : memref<4x1x128xf32, #tpu.memory_space<vmem>>, vector<1x1x128xf32>
    %24 = vector.shape_cast %23 : vector<1x1x128xf32> to vector<1x128xf32>
    %25 = vector.broadcast %24 : vector<1x128xf32> to vector<8x128xf32>
    %26 = arith.addf %22, %25 : vector<8x128xf32>
    %cst_20 = arith.constant 0.000000e+00 : f32
    %27 = vector.broadcast %cst_20 : f32 to vector<8x128xf32>
    %28 = arith.maximumf %26, %27 : vector<8x128xf32>
    %29 = arith.truncf %28 : vector<8x128xf32> to vector<8x128xbf16>
    %c2_21 = arith.constant 2 : index
    %c0_22 = arith.constant 0 : index
    %c0_23 = arith.constant 0 : index
    %30 = vector.load %arg3[%c2_21, %c0_22, %c0_23] : memref<3x128x128xbf16, #tpu.memory_space<vmem>>, vector<1x128x128xbf16>
    %31 = vector.shape_cast %30 : vector<1x128x128xbf16> to vector<128x128xbf16>
    %cst_24 = arith.constant dense<0.000000e+00> : vector<8x128xf32>
    %32 = tpu.matmul %29, %31, %cst_24 {dimension_numbers = #tpu.dot_dimension_numbers<[1], [0], [0], [1], [0, 0, 1, 1], [], []>} : vector<8x128xbf16>, vector<128x128xbf16>, vector<8x128xf32> -> vector<8x128xf32>
    %c3 = arith.constant 3 : index
    %c0_25 = arith.constant 0 : index
    %c0_26 = arith.constant 0 : index
    %33 = vector.load %arg4[%c3, %c0_25, %c0_26] : memref<4x1x128xf32, #tpu.memory_space<vmem>>, vector<1x1x128xf32>
    %34 = vector.shape_cast %33 : vector<1x1x128xf32> to vector<1x128xf32>
    %35 = vector.broadcast %34 : vector<1x128xf32> to vector<8x128xf32>
    %36 = arith.addf %32, %35 : vector<8x128xf32>
    %cst_27 = arith.constant 0.000000e+00 : f32
    %37 = vector.broadcast %cst_27 : f32 to vector<8x128xf32>
    %38 = arith.maximumf %36, %37 : vector<8x128xf32>
    %39 = arith.truncf %38 : vector<8x128xf32> to vector<8x128xbf16>
    %c0_28 = arith.constant 0 : index
    %c0_29 = arith.constant 0 : index
    %40 = vector.load %arg5[%c0_28, %c0_29] : memref<128x8xbf16, #tpu.memory_space<vmem>>, vector<128x8xbf16>
    %cst_30 = arith.constant dense<0.000000e+00> : vector<8x8xf32>
    %41 = tpu.matmul %39, %40, %cst_30 {dimension_numbers = #tpu.dot_dimension_numbers<[1], [0], [0], [1], [0, 0, 1, 1], [], []>} : vector<8x128xbf16>, vector<128x8xbf16>, vector<8x8xf32> -> vector<8x8xf32>
    %c0_31 = arith.constant 0 : index
    %c0_32 = arith.constant 0 : index
    %42 = vector.load %arg6[%c0_31, %c0_32] : memref<1x8xf32, #tpu.memory_space<vmem>>, vector<1x8xf32>
    %43 = vector.broadcast %42 : vector<1x8xf32> to vector<8x8xf32>
    %44 = arith.addf %41, %43 : vector<8x8xf32>
    %cst_33 = arith.constant 0.000000e+00 : f32
    %45 = vector.broadcast %cst_33 : f32 to vector<8x8xf32>
    %46 = arith.subf %45, %44 : vector<8x8xf32>
    %47 = math.exp %46 : vector<8x8xf32>
    %cst_34 = arith.constant 1.000000e+00 : f32
    %48 = vector.broadcast %cst_34 : f32 to vector<8x8xf32>
    %49 = arith.addf %48, %47 : vector<8x8xf32>
    %cst_35 = arith.constant 1.000000e+00 : f32
    %50 = vector.broadcast %cst_35 : f32 to vector<8x8xf32>
    %51 = arith.divf %50, %49 : vector<8x8xf32>
    %c0_36 = arith.constant 0 : index
    %c0_37 = arith.constant 0 : index
    %52 = vector.load %arg7[%c0_36, %c0_37] : memref<8x8xf32, #tpu.memory_space<vmem>>, vector<8x8xf32>
    tpu.vector_store %arg7[%c0_36, %c0_37], %51 {strides = array<i32>} : memref<8x8xf32, #tpu.memory_space<vmem>>, vector<8x8xf32>,
    return
  }
  func.func @transform_0(%arg0: i32) -> (i32, i32) {
    %c0_i32 = arith.constant 0 : i32
    %c0_i32_0 = arith.constant 0 : i32
    return %arg0, %c0_i32 : i32, i32
  }
  func.func @transform_1(%arg0: i32) -> (i32, i32) {
    %c0_i32 = arith.constant 0 : i32
    %c0_i32_0 = arith.constant 0 : i32
    %c0_i32_1 = arith.constant 0 : i32
    return %c0_i32, %c0_i32_0 : i32, i32
  }
  func.func @transform_2(%arg0: i32) -> (i32, i32, i32) {
    %c0_i32 = arith.constant 0 : i32
    %c0_i32_0 = arith.constant 0 : i32
    %c0_i32_1 = arith.constant 0 : i32
    %c0_i32_2 = arith.constant 0 : i32
    return %c0_i32, %c0_i32_0, %c0_i32_1 : i32, i32, i32
  }
  func.func @transform_3(%arg0: i32) -> (i32, i32, i32) {
    %c0_i32 = arith.constant 0 : i32
    %c0_i32_0 = arith.constant 0 : i32
    %c0_i32_1 = arith.constant 0 : i32
    %c0_i32_2 = arith.constant 0 : i32
    return %c0_i32, %c0_i32_0, %c0_i32_1 : i32, i32, i32
  }
  func.func @transform_4(%arg0: i32) -> (i32, i32) {
    %c0_i32 = arith.constant 0 : i32
    %c0_i32_0 = arith.constant 0 : i32
    %c0_i32_1 = arith.constant 0 : i32
    return %c0_i32, %c0_i32_0 : i32, i32
  }
  func.func @transform_5(%arg0: i32) -> (i32, i32) {
    %c0_i32 = arith.constant 0 : i32
    %c0_i32_0 = arith.constant 0 : i32
    %c0_i32_1 = arith.constant 0 : i32
    return %c0_i32, %c0_i32_0 : i32, i32
  }
  func.func @transform_6(%arg0: i32) -> (i32, i32) {
    %c0_i32 = arith.constant 0 : i32
    %c0_i32_0 = arith.constant 0 : i32
    return %arg0, %c0_i32 : i32, i32
  }
}

</mosaic_0001>

<llo_original>
// kernel: tpu_custom_call.1
$region0: #{tpu_custom_call.1}
  #allocation0 [shape = 'u32[]', space=smem, size = 0x4, offset = 0x4, fixed_abs, tag = 'smem constant byte address 0x4 - core index']
  #allocation1 [shape = 'u32[144,128]{1,0:T(1,128)}', space=vmem, size = 0x12000, scoped, tag = 'internal scratch']
  %s0 = inlined_call_operand.vmem [shape: bf16[8,32], index: 0, kind: input, shape index: {}]
  %s1 = inlined_call_operand.vmem [shape: bf16[32,128], index: 1, kind: input, shape index: {}]
  %s2 = inlined_call_operand.hbm [shape: bf16[3,128,128], index: 2, kind: input, shape index: {}]
  %s3 = inlined_call_operand.vmem [shape: f32[4,1,128], index: 3, kind: input, shape index: {}]
  %s4 = inlined_call_operand.vmem [shape: bf16[128,8], index: 4, kind: input, shape index: {}]
  %s5 = inlined_call_operand.vmem [shape: f32[1,8], index: 5, kind: input, shape index: {}]
  %s6 = inlined_call_operand.hbm [shape: f32[8,8], index: 6, kind: output, shape index: {}]
  %s7 = sld [smem:[#allocation0]]
  $region38: #{tpu_custom_call.1} parent=0
    _
  %s9 = ssub.s32 1, %s7
  %s10 = scalar_select 0, %s9, %s7
  $region1: #{tpu_custom_call.1} parent=0
    #allocation2 [shape = 'u8[98304]{0}', space=vmem, size = 0x18000, scoped, tag = 'input window, operand 2, single buffered']
    #allocation3 [shape = 's32[1]{0}', space=sflag, size = 0x4, scoped, tag = 'scoped memory for tpu_custom_call.1']
    #allocation4 [shape = 's32[1]{0}', space=sflag, size = 0x4, scoped, tag = 'scoped memory for tpu_custom_call.1']
    #allocation5 [shape = 'u8[4096]{0}', space=vmem, size = 0x1000, scoped, tag = 'output window, operand 0, single buffered']
    %11 = vsyncpa [#allocation3], 0
    %12 = vsyncpa [#allocation4], 0
    // Predicated region
    $region2: #{tpu_custom_call.1} parent=1 // pred_check
      _
    $region3: #{tpu_custom_call.1} parent=1 // pred_check_branch
      %14 = sbr.rel (0) target = $region5
    $region4: #{tpu_custom_call.1} parent=1 // pred_region
      _
    $region5: #{tpu_custom_call.1} parent=1 // pred_fallthru
      _
    // Predicated region
    $region6: #{tpu_custom_call.1} parent=1 // pred_check
      _
    $region7: #{tpu_custom_call.1} parent=1 // pred_check_branch
      %16 = sbr.rel (0) target = $region9
    $region8: #{tpu_custom_call.1} parent=1 // pred_region
      _
    $region9: #{tpu_custom_call.1} parent=1 // pred_fallthru
      _
    // Predicated region
    $region10: #{tpu_custom_call.1} parent=1 // pred_check
      _
    $region11: #{tpu_custom_call.1} parent=1 // pred_check_branch
      %18 = sbr.rel (0) target = $region13
    $region12: #{tpu_custom_call.1} parent=1 // pred_region
      %s20 = ssub.s32 3072, 3072
      %21 = vsyncadd [#allocation3], %s20
      %s22 = sshll.u32 [#allocation2], 4
      %s23 = int_to_ptr.vmem [resolvable:$true] %s22
      %28 = dma.hbm_to_vmem [thread:$0]  %s2, 3072, %s23, [#allocation3], 64, 64, 4
    $region13: #{tpu_custom_call.1} parent=1 // pred_fallthru
      _
    // Predicated region
    $region14: #{tpu_custom_call.1} parent=1 // pred_check
      _
    $region15: #{tpu_custom_call.1} parent=1 // pred_check_branch
      %30 = sbr.rel (0) target = $region17
    $region16: #{tpu_custom_call.1} parent=1 // pred_region
      _
    $region17: #{tpu_custom_call.1} parent=1 // pred_fallthru
      _
    // Predicated region
    $region18: #{tpu_custom_call.1} parent=1 // pred_check
      _
    $region19: #{tpu_custom_call.1} parent=1 // pred_check_branch
      %32 = sbr.rel (0) target = $region21
    $region20: #{tpu_custom_call.1} parent=1 // pred_region
      _
    $region21: #{tpu_custom_call.1} parent=1 // pred_fallthru
      _
    // Predicated region
    $region22: #{tpu_custom_call.1} parent=1 // pred_check
      _
    $region23: #{tpu_custom_call.1} parent=1 // pred_check_branch
      %34 = sbr.rel (0) target = $region25
    $region24: #{tpu_custom_call.1} parent=1 // pred_region
      _
    $region25: #{tpu_custom_call.1} parent=1 // pred_fallthru
      _
    // Predicated region
    $region26: #{tpu_custom_call.1} parent=1 // pred_check
      _
    $region27: #{tpu_custom_call.1} parent=1 // pred_check_branch
      %36 = sbr.rel (0) target = $region29
    $region28: #{tpu_custom_call.1} parent=1 // pred_region
      %37 = dma.done [#allocation3], 3072
    $region29: #{tpu_custom_call.1} parent=1 // pred_fallthru
      _
    %v39 = vld [vmem:[%s0] sm:$0xf]
    %v40 = vld [vmem:[%s1] sm:$0xf]
    %v41 = vld [vmem:[%s1 + $0x4] sm:$0xf]
    %v42 = vld [vmem:[%s1 + $0x8] sm:$0xf]
    %v43 = vld [vmem:[%s1 + $0xc] sm:$0xf]
    %v44 = vld [vmem:[%s3] sm:$0x1]
    %v46 = vlaneseq
    %v47 = vshrl.u32 %v46, 7
    %v48 = vsub.s32 0, %v47
    %v49 = vrot.slane %v44, %v48
    %v55 = vunpack.c.l.b16 %v40
    %v56 = vunpack.c.l.b16 %v41
    %v57 = vunpack.c.l.b16 %v42
    %v58 = vunpack.c.l.b16 %v43
    %v59 = vpack.c.b16 %v56, %v55
    %v60 = vpack.c.b16 %v58, %v57
    %vm63 = vcmask 261120
    %v65 = vsel %vm63, %v39, 0
    %67 = vmatprep.subr.bf16.mxu0 0
    %68 = vmatpush1.bf16.msra.mxu0 %v59
    %69 = vmatprep.subr.bf16.mxu0 0
    %70 = vmatpush1.bf16.msra.mxu0 %v60
    %71 = vmatprep.subr.bf16.mxu0 0
    %72 = vmatpush1.bf16.msra.mxu0 0
    %73 = vmatprep.subr.bf16.mxu0 0
    %74 = vmatpush1.bf16.msra.mxu0 0
    %75 = vmatprep.subr.bf16.mxu0 0
    %76 = vmatpush1.bf16.msra.mxu0 0
    %77 = vmatprep.subr.bf16.mxu0 0
    %78 = vmatpush1.bf16.msra.mxu0 0
    %79 = vmatprep.subr.bf16.mxu0 0
    %80 = vmatpush1.bf16.msra.mxu0 0
    %81 = vmatprep.subr.bf16.mxu0 0
    %82 = vmatpush1.bf16.msra.mxu0 0
    %83 = vmatprep.subr.bf16.mxu0 0
    %84 = vmatpush1.bf16.msra.mxu0 0
    %85 = vmatprep.subr.bf16.mxu0 0
    %86 = vmatpush1.bf16.msra.mxu0 0
    %87 = vmatprep.subr.bf16.mxu0 0
    %88 = vmatpush1.bf16.msra.mxu0 0
    %89 = vmatprep.subr.bf16.mxu0 0
    %90 = vmatpush1.bf16.msra.mxu0 0
    %91 = vmatprep.subr.bf16.mxu0 0
    %92 = vmatpush1.bf16.msra.mxu0 0
    %93 = vmatprep.subr.bf16.mxu0 0
    %94 = vmatpush1.bf16.msra.mxu0 0
    %95 = vmatprep.subr.bf16.mxu0 0
    %96 = vmatpush1.bf16.msra.mxu0 0
    %97 = vmatprep.subr.bf16.mxu0 0
    %98 = vmatpush1.bf16.msra.mxu0 0
    %99 = vmatprep.mubr.bf16.mxu0 0
    %100 = vmatmul.mubr.bf16.gmra.mrb[0].mxu0 %v65
    %v101 = vpop.f32.mrb[0].mxu0
    %v102 = vadd.f32 %v49, %v101
    %v103 = vpop.f32.mrb[0].mxu0
    %v104 = vpop.f32.mrb[0].mxu0
    %v105 = vpop.f32.mrb[0].mxu0
    %106 = vdwg.mxu0
    %v107 = vmax.f32 %v102, 0.0
    %v108 = vpack.c.bf16 %v107, %v107
    %v109 = vld [vmem:[#allocation2] sm:$0xf]
    %v110 = vld [vmem:[#allocation2 + $0x4] sm:$0xf]
    %v111 = vld [vmem:[#allocation2 + $0x8] sm:$0xf]
    %v112 = vld [vmem:[#allocation2 + $0xc] sm:$0xf]
    %v113 = vld [vmem:[#allocation2 + $0x10] sm:$0xf]
    %v114 = vld [vmem:[#allocation2 + $0x14] sm:$0xf]
    %v115 = vld [vmem:[#allocation2 + $0x18] sm:$0xf]
    %v116 = vld [vmem:[#allocation2 + $0x1c] sm:$0xf]
    %v117 = vld [vmem:[#allocation2 + $0x20] sm:$0xf]
    %v118 = vld [vmem:[#allocation2 + $0x24] sm:$0xf]
    %v119 = vld [vmem:[#allocation2 + $0x28] sm:$0xf]
    %v120 = vld [vmem:[#allocation2 + $0x2c] sm:$0xf]
    %v121 = vld [vmem:[#allocation2 + $0x30] sm:$0xf]
    %v122 = vld [vmem:[#allocation2 + $0x34] sm:$0xf]
    %v123 = vld [vmem:[#allocation2 + $0x38] sm:$0xf]
    %v124 = vld [vmem:[#allocation2 + $0x3c] sm:$0xf]
    %s125 = scalar_lea.vmem %s3, 1
    %v126 = vld [vmem:[%s125] sm:$0x1]
    %v128 = vlaneseq
    %v129 = vshrl.u32 %v128, 7
    %v130 = vsub.s32 0, %v129
    %v131 = vrot.slane %v126, %v130
    %v149 = vunpack.c.l.b16 %v109
    %v150 = vunpack.c.l.b16 %v110
    %v151 = vunpack.c.l.b16 %v111
    %v152 = vunpack.c.l.b16 %v112
    %v153 = vunpack.c.l.b16 %v113
    %v154 = vunpack.c.l.b16 %v114
    %v155 = vunpack.c.l.b16 %v115
    %v156 = vunpack.c.l.b16 %v116
    %v157 = vunpack.c.l.b16 %v117
    %v158 = vunpack.c.l.b16 %v118
    %v159 = vunpack.c.l.b16 %v119
    %v160 = vunpack.c.l.b16 %v120
    %v161 = vunpack.c.l.b16 %v121
    %v162 = vunpack.c.l.b16 %v122
    %v163 = vunpack.c.l.b16 %v123
    %v164 = vunpack.c.l.b16 %v124
    %v165 = vpack.c.b16 %v150, %v149
    %v166 = vpack.c.b16 %v152, %v151
    %v167 = vpack.c.b16 %v154, %v153
    %v168 = vpack.c.b16 %v156, %v155
    %v169 = vpack.c.b16 %v158, %v157
    %v170 = vpack.c.b16 %v160, %v159
    %v171 = vpack.c.b16 %v162, %v161
    %v172 = vpack.c.b16 %v164, %v163
    %181 = vmatprep.subr.bf16.mxu0 0
    %182 = vmatpush1.bf16.msra.mxu0 %v165
    %183 = vmatprep.subr.bf16.mxu0 0
    %184 = vmatpush1.bf16.msra.mxu0 %v166
    %185 = vmatprep.subr.bf16.mxu0 0
    %186 = vmatpush1.bf16.msra.mxu0 %v167
    %187 = vmatprep.subr.bf16.mxu0 0
    %188 = vmatpush1.bf16.msra.mxu0 %v168
    %189 = vmatprep.subr.bf16.mxu0 0
    %190 = vmatpush1.bf16.msra.mxu0 %v169
    %191 = vmatprep.subr.bf16.mxu0 0
    %192 = vmatpush1.bf16.msra.mxu0 %v170
    %193 = vmatprep.subr.bf16.mxu0 0
    %194 = vmatpush1.bf16.msra.mxu0 %v171
    %195 = vmatprep.subr.bf16.mxu0 0
    %196 = vmatpush1.bf16.msra.mxu0 %v172
    %197 = vmatprep.subr.bf16.mxu0 0
    %198 = vmatpush1.bf16.msra.mxu0 0
    %199 = vmatprep.subr.bf16.mxu0 0
    %200 = vmatpush1.bf16.msra.mxu0 0
    %201 = vmatprep.subr.bf16.mxu0 0
    %202 = vmatpush1.bf16.msra.mxu0 0
    %203 = vmatprep.subr.bf16.mxu0 0
    %204 = vmatpush1.bf16.msra.mxu0 0
    %205 = vmatprep.subr.bf16.mxu0 0
    %206 = vmatpush1.bf16.msra.mxu0 0
    %207 = vmatprep.subr.bf16.mxu0 0
    %208 = vmatpush1.bf16.msra.mxu0 0
    %209 = vmatprep.subr.bf16.mxu0 0
    %210 = vmatpush1.bf16.msra.mxu0 0
    %211 = vmatprep.subr.bf16.mxu0 0
    %212 = vmatpush1.bf16.msra.mxu0 0
    %213 = vmatprep.mubr.bf16.mxu0 0
    %214 = vmatmul.mubr.bf16.gmra.mrb[0].mxu0 %v108
    %v215 = vpop.f32.mrb[0].mxu0
    %v216 = vadd.f32 %v131, %v215
    %v217 = vpop.f32.mrb[0].mxu0
    %v218 = vpop.f32.mrb[0].mxu0
    %v219 = vpop.f32.mrb[0].mxu0
    %220 = vdwg.mxu0
    %v221 = vmax.f32 %v216, 0.0
    %v222 = vpack.c.bf16 %v221, %v221
    %s223 = scalar_lea.vmem [#allocation2], 64
    %v224 = vld [vmem:[%s223] sm:$0xf]
    %v225 = vld [vmem:[%s223 + $0x4] sm:$0xf]
    %v226 = vld [vmem:[%s223 + $0x8] sm:$0xf]
    %v227 = vld [vmem:[%s223 + $0xc] sm:$0xf]
    %v228 = vld [vmem:[%s223 + $0x10] sm:$0xf]
    %v229 = vld [vmem:[%s223 + $0x14] sm:$0xf]
    %v230 = vld [vmem:[%s223 + $0x18] sm:$0xf]
    %v231 = vld [vmem:[%s223 + $0x1c] sm:$0xf]
    %v232 = vld [vmem:[%s223 + $0x20] sm:$0xf]
    %v233 = vld [vmem:[%s223 + $0x24] sm:$0xf]
    %v234 = vld [vmem:[%s223 + $0x28] sm:$0xf]
    %v235 = vld [vmem:[%s223 + $0x2c] sm:$0xf]
    %v236 = vld [vmem:[%s223 + $0x30] sm:$0xf]
    %v237 = vld [vmem:[%s223 + $0x34] sm:$0xf]
    %v238 = vld [vmem:[%s223 + $0x38] sm:$0xf]
    %v239 = vld [vmem:[%s223 + $0x3c] sm:$0xf]
    %s240 = scalar_lea.vmem %s3, 2
    %v241 = vld [vmem:[%s240] sm:$0x1]
    %v243 = vlaneseq
    %v244 = vshrl.u32 %v243, 7
    %v245 = vsub.s32 0, %v244
    %v246 = vrot.slane %v241, %v245
    %v264 = vunpack.c.l.b16 %v224
    %v265 = vunpack.c.l.b16 %v225
    %v266 = vunpack.c.l.b16 %v226
    %v267 = vunpack.c.l.b16 %v227
    %v268 = vunpack.c.l.b16 %v228
    %v269 = vunpack.c.l.b16 %v229
    %v270 = vunpack.c.l.b16 %v230
    %v271 = vunpack.c.l.b16 %v231
    %v272 = vunpack.c.l.b16 %v232
    %v273 = vunpack.c.l.b16 %v233
    %v274 = vunpack.c.l.b16 %v234
    %v275 = vunpack.c.l.b16 %v235
    %v276 = vunpack.c.l.b16 %v236
    %v277 = vunpack.c.l.b16 %v237
    %v278 = vunpack.c.l.b16 %v238
    %v279 = vunpack.c.l.b16 %v239
    %v280 = vpack.c.b16 %v265, %v264
    %v281 = vpack.c.b16 %v267, %v266
    %v282 = vpack.c.b16 %v269, %v268
    %v283 = vpack.c.b16 %v271, %v270
    %v284 = vpack.c.b16 %v273, %v272
    %v285 = vpack.c.b16 %v275, %v274
    %v286 = vpack.c.b16 %v277, %v276
    %v287 = vpack.c.b16 %v279, %v278
    %296 = vmatprep.subr.bf16.mxu0 0
    %297 = vmatpush1.bf16.msra.mxu0 %v280
    %298 = vmatprep.subr.bf16.mxu0 0
    %299 = vmatpush1.bf16.msra.mxu0 %v281
    %300 = vmatprep.subr.bf16.mxu0 0
    %301 = vmatpush1.bf16.msra.mxu0 %v282
    %302 = vmatprep.subr.bf16.mxu0 0
    %303 = vmatpush1.bf16.msra.mxu0 %v283
    %304 = vmatprep.subr.bf16.mxu0 0
    %305 = vmatpush1.bf16.msra.mxu0 %v284
    %306 = vmatprep.subr.bf16.mxu0 0
    %307 = vmatpush1.bf16.msra.mxu0 %v285
    %308 = vmatprep.subr.bf16.mxu0 0
    %309 = vmatpush1.bf16.msra.mxu0 %v286
    %310 = vmatprep.subr.bf16.mxu0 0
    %311 = vmatpush1.bf16.msra.mxu0 %v287
    %312 = vmatprep.subr.bf16.mxu0 0
    %313 = vmatpush1.bf16.msra.mxu0 0
    %314 = vmatprep.subr.bf16.mxu0 0
    %315 = vmatpush1.bf16.msra.mxu0 0
    %316 = vmatprep.subr.bf16.mxu0 0
    %317 = vmatpush1.bf16.msra.mxu0 0
    %318 = vmatprep.subr.bf16.mxu0 0
    %319 = vmatpush1.bf16.msra.mxu0 0
    %320 = vmatprep.subr.bf16.mxu0 0
    %321 = vmatpush1.bf16.msra.mxu0 0
    %322 = vmatprep.subr.bf16.mxu0 0
    %323 = vmatpush1.bf16.msra.mxu0 0
    %324 = vmatprep.subr.bf16.mxu0 0
    %325 = vmatpush1.bf16.msra.mxu0 0
    %326 = vmatprep.subr.bf16.mxu0 0
    %327 = vmatpush1.bf16.msra.mxu0 0
    %328 = vmatprep.mubr.bf16.mxu0 0
    %329 = vmatmul.mubr.bf16.gmra.mrb[0].mxu0 %v222
    %v330 = vpop.f32.mrb[0].mxu0
    %v331 = vadd.f32 %v246, %v330
    %v332 = vpop.f32.mrb[0].mxu0
    %v333 = vpop.f32.mrb[0].mxu0
    %v334 = vpop.f32.mrb[0].mxu0
    %335 = vdwg.mxu0
    %v336 = vmax.f32 %v331, 0.0
    %v337 = vpack.c.bf16 %v336, %v336
    %s338 = scalar_lea.vmem [#allocation2], 128
    %v339 = vld [vmem:[%s338] sm:$0xf]
    %v340 = vld [vmem:[%s338 + $0x4] sm:$0xf]
    %v341 = vld [vmem:[%s338 + $0x8] sm:$0xf]
    %v342 = vld [vmem:[%s338 + $0xc] sm:$0xf]
    %v343 = vld [vmem:[%s338 + $0x10] sm:$0xf]
    %v344 = vld [vmem:[%s338 + $0x14] sm:$0xf]
    %v345 = vld [vmem:[%s338 + $0x18] sm:$0xf]
    %v346 = vld [vmem:[%s338 + $0x1c] sm:$0xf]
    %v347 = vld [vmem:[%s338 + $0x20] sm:$0xf]
    %v348 = vld [vmem:[%s338 + $0x24] sm:$0xf]
    %v349 = vld [vmem:[%s338 + $0x28] sm:$0xf]
    %v350 = vld [vmem:[%s338 + $0x2c] sm:$0xf]
    %v351 = vld [vmem:[%s338 + $0x30] sm:$0xf]
    %v352 = vld [vmem:[%s338 + $0x34] sm:$0xf]
    %v353 = vld [vmem:[%s338 + $0x38] sm:$0xf]
    %v354 = vld [vmem:[%s338 + $0x3c] sm:$0xf]
    %s355 = scalar_lea.vmem %s3, 3
    %v356 = vld [vmem:[%s355] sm:$0x1]
    %v358 = vlaneseq
    %v359 = vshrl.u32 %v358, 7
    %v360 = vsub.s32 0, %v359
    %v361 = vrot.slane %v356, %v360
    %v379 = vunpack.c.l.b16 %v339
    %v380 = vunpack.c.l.b16 %v340
    %v381 = vunpack.c.l.b16 %v341
    %v382 = vunpack.c.l.b16 %v342
    %v383 = vunpack.c.l.b16 %v343
    %v384 = vunpack.c.l.b16 %v344
    %v385 = vunpack.c.l.b16 %v345
    %v386 = vunpack.c.l.b16 %v346
    %v387 = vunpack.c.l.b16 %v347
    %v388 = vunpack.c.l.b16 %v348
    %v389 = vunpack.c.l.b16 %v349
    %v390 = vunpack.c.l.b16 %v350
    %v391 = vunpack.c.l.b16 %v351
    %v392 = vunpack.c.l.b16 %v352
    %v393 = vunpack.c.l.b16 %v353
    %v394 = vunpack.c.l.b16 %v354
    %v395 = vpack.c.b16 %v380, %v379
    %v396 = vpack.c.b16 %v382, %v381
    %v397 = vpack.c.b16 %v384, %v383
    %v398 = vpack.c.b16 %v386, %v385
    %v399 = vpack.c.b16 %v388, %v387
    %v400 = vpack.c.b16 %v390, %v389
    %v401 = vpack.c.b16 %v392, %v391
    %v402 = vpack.c.b16 %v394, %v393
    %411 = vmatprep.subr.bf16.mxu0 0
    %412 = vmatpush1.bf16.msra.mxu0 %v395
    %413 = vmatprep.subr.bf16.mxu0 0
    %414 = vmatpush1.bf16.msra.mxu0 %v396
    %415 = vmatprep.subr.bf16.mxu0 0
    %416 = vmatpush1.bf16.msra.mxu0 %v397
    %417 = vmatprep.subr.bf16.mxu0 0
    %418 = vmatpush1.bf16.msra.mxu0 %v398
    %419 = vmatprep.subr.bf16.mxu0 0
    %420 = vmatpush1.bf16.msra.mxu0 %v399
    %421 = vmatprep.subr.bf16.mxu0 0
    %422 = vmatpush1.bf16.msra.mxu0 %v400
    %423 = vmatprep.subr.bf16.mxu0 0
    %424 = vmatpush1.bf16.msra.mxu0 %v401
    %425 = vmatprep.subr.bf16.mxu0 0
    %426 = vmatpush1.bf16.msra.mxu0 %v402
    %427 = vmatprep.subr.bf16.mxu0 0
    %428 = vmatpush1.bf16.msra.mxu0 0
    %429 = vmatprep.subr.bf16.mxu0 0
    %430 = vmatpush1.bf16.msra.mxu0 0
    %431 = vmatprep.subr.bf16.mxu0 0
    %432 = vmatpush1.bf16.msra.mxu0 0
    %433 = vmatprep.subr.bf16.mxu0 0
    %434 = vmatpush1.bf16.msra.mxu0 0
    %435 = vmatprep.subr.bf16.mxu0 0
    %436 = vmatpush1.bf16.msra.mxu0 0
    %437 = vmatprep.subr.bf16.mxu0 0
    %438 = vmatpush1.bf16.msra.mxu0 0
    %439 = vmatprep.subr.bf16.mxu0 0
    %440 = vmatpush1.bf16.msra.mxu0 0
    %441 = vmatprep.subr.bf16.mxu0 0
    %442 = vmatpush1.bf16.msra.mxu0 0
    %443 = vmatprep.mubr.bf16.mxu0 0
    %444 = vmatmul.mubr.bf16.gmra.mrb[0].mxu0 %v337
    %v445 = vpop.f32.mrb[0].mxu0
    %v446 = vadd.f32 %v361, %v445
    %v447 = vpop.f32.mrb[0].mxu0
    %v448 = vpop.f32.mrb[0].mxu0
    %v449 = vpop.f32.mrb[0].mxu0
    %450 = vdwg.mxu0
    %v451 = vmax.f32 %v446, 0.0
    %v452 = vpack.c.bf16 %v451, %v451
    %v453 = vld [vmem:[%s4] sm:$0xf]
    %v454 = vld [vmem:[%s4 + $0x4] sm:$0xf]
    %v455 = vld [vmem:[%s4 + $0x8] sm:$0xf]
    %v456 = vld [vmem:[%s4 + $0xc] sm:$0xf]
    %v457 = vld [vmem:[%s4 + $0x10] sm:$0xf]
    %v458 = vld [vmem:[%s4 + $0x14] sm:$0xf]
    %v459 = vld [vmem:[%s4 + $0x18] sm:$0xf]
    %v460 = vld [vmem:[%s4 + $0x1c] sm:$0xf]
    %v461 = vld [vmem:[%s4 + $0x20] sm:$0xf]
    %v462 = vld [vmem:[%s4 + $0x24] sm:$0xf]
    %v463 = vld [vmem:[%s4 + $0x28] sm:$0xf]
    %v464 = vld [vmem:[%s4 + $0x2c] sm:$0xf]
    %v465 = vld [vmem:[%s4 + $0x30] sm:$0xf]
    %v466 = vld [vmem:[%s4 + $0x34] sm:$0xf]
    %v467 = vld [vmem:[%s4 + $0x38] sm:$0xf]
    %v468 = vld [vmem:[%s4 + $0x3c] sm:$0xf]
    %v469 = vld [vmem:[%s5] sm:$0x1]
    %v471 = vlaneseq
    %v472 = vshrl.u32 %v471, 7
    %v473 = vsub.s32 0, %v472
    %v474 = vrot.slane %v469, %v473
    %v492 = vunpack.c.l.b16 %v453
    %v493 = vunpack.c.l.b16 %v454
    %v494 = vunpack.c.l.b16 %v455
    %v495 = vunpack.c.l.b16 %v456
    %v496 = vunpack.c.l.b16 %v457
    %v497 = vunpack.c.l.b16 %v458
    %v498 = vunpack.c.l.b16 %v459
    %v499 = vunpack.c.l.b16 %v460
    %v500 = vunpack.c.l.b16 %v461
    %v501 = vunpack.c.l.b16 %v462
    %v502 = vunpack.c.l.b16 %v463
    %v503 = vunpack.c.l.b16 %v464
    %v504 = vunpack.c.l.b16 %v465
    %v505 = vunpack.c.l.b16 %v466
    %v506 = vunpack.c.l.b16 %v467
    %v507 = vunpack.c.l.b16 %v468
    %v508 = vpack.c.b16 %v493, %v492
    %v509 = vpack.c.b16 %v495, %v494
    %v510 = vpack.c.b16 %v497, %v496
    %v511 = vpack.c.b16 %v499, %v498
    %v512 = vpack.c.b16 %v501, %v500
    %v513 = vpack.c.b16 %v503, %v502
    %v514 = vpack.c.b16 %v505, %v504
    %v515 = vpack.c.b16 %v507, %v506
    %524 = vmatprep.subr.bf16.mxu0 0
    %525 = vmatpush1.bf16.msra.mxu0 %v508
    %526 = vmatprep.subr.bf16.mxu0 0
    %527 = vmatpush1.bf16.msra.mxu0 %v509
    %528 = vmatprep.subr.bf16.mxu0 0
    %529 = vmatpush1.bf16.msra.mxu0 %v510
    %530 = vmatprep.subr.bf16.mxu0 0
    %531 = vmatpush1.bf16.msra.mxu0 %v511
    %532 = vmatprep.subr.bf16.mxu0 0
    %533 = vmatpush1.bf16.msra.mxu0 %v512
    %534 = vmatprep.subr.bf16.mxu0 0
    %535 = vmatpush1.bf16.msra.mxu0 %v513
    %536 = vmatprep.subr.bf16.mxu0 0
    %537 = vmatpush1.bf16.msra.mxu0 %v514
    %538 = vmatprep.subr.bf16.mxu0 0
    %539 = vmatpush1.bf16.msra.mxu0 %v515
    %540 = vmatprep.subr.bf16.mxu0 0
    %541 = vmatpush1.bf16.msra.mxu0 0
    %542 = vmatprep.subr.bf16.mxu0 0
    %543 = vmatpush1.bf16.msra.mxu0 0
    %544 = vmatprep.subr.bf16.mxu0 0
    %545 = vmatpush1.bf16.msra.mxu0 0
    %546 = vmatprep.subr.bf16.mxu0 0
    %547 = vmatpush1.bf16.msra.mxu0 0
    %548 = vmatprep.subr.bf16.mxu0 0
    %549 = vmatpush1.bf16.msra.mxu0 0
    %550 = vmatprep.subr.bf16.mxu0 0
    %551 = vmatpush1.bf16.msra.mxu0 0
    %552 = vmatprep.subr.bf16.mxu0 0
    %553 = vmatpush1.bf16.msra.mxu0 0
    %554 = vmatprep.subr.bf16.mxu0 0
    %555 = vmatpush1.bf16.msra.mxu0 0
    %556 = vmatprep.mubr.bf16.mxu0 0
    %557 = vmatmul.mubr.bf16.gmra.mrb[0].mxu0 %v452
    %v558 = vpop.f32.mrb[0].mxu0
    %v559 = vadd.f32 %v474, %v558
    %v560 = vpop.f32.mrb[0].mxu0
    %v561 = vpop.f32.mrb[0].mxu0
    %v562 = vpop.f32.mrb[0].mxu0
    %563 = vdwg.mxu0
    %v564 = vsub.f32 0.0, %v559
    %v565 = vmul.f32 %v564, 1.442695
    %v566 = vpow.pop %v565
    %v567 = vadd.f32 %v566, 1.0
    %v568 = vrcp.pop %v567
    %v569 = vmul.f32 1.0, %v568
    %vm570 = vcmask 64512
    %571 = vst.msk [vmem:[#allocation5] sm:$0xff] %vm570, %v569
    // Predicated region
    $region30: #{tpu_custom_call.1} parent=1 // pred_check
      _
    $region31: #{tpu_custom_call.1} parent=1 // pred_check_branch
      %573 = sbr.rel (0) target = $region33
    $region32: #{tpu_custom_call.1} parent=1 // pred_region
      %s575 = ssub.s32 128, 128
      %576 = vsyncadd [#allocation4], %s575
      %s578 = sshll.u32 [#allocation5], 4
      %s579 = int_to_ptr.vmem [resolvable:$true] %s578
      %581 = dma.vmem_to_hbm [thread:$0]  %s579, 128, %s6, [#allocation4]
    $region33: #{tpu_custom_call.1} parent=1 // pred_fallthru
      _
    // Predicated region
    $region34: #{tpu_custom_call.1} parent=1 // pred_check
      _
    $region35: #{tpu_custom_call.1} parent=1 // pred_check_branch
      %583 = sbr.rel (0) target = $region37
    $region36: #{tpu_custom_call.1} parent=1 // pred_region
      %584 = dma.done [#allocation4], 128
    $region37: #{tpu_custom_call.1} parent=1 // pred_fallthru
      _
    %585 = vsyncpa [#allocation3], 1
    %586 = vsyncpa [#allocation4], 1

</llo_original>
